<compile_context>
chip_gen: v6e
topology: v6e:2x2x1
jax: 0.10.0
libtpu: 0.0.40
codegen_flags: <defaults>
</compile_context>

<pallas_src>
import functools
import math

import numpy as np
import jax
import jax.numpy as jnp
from jax.experimental import pallas as pl
from jax.experimental.pallas import tpu as pltpu


def _round_up(x, m):
    return (x + m - 1) // m * m


# ----------------------------- fc (+ BN stats) kernel -----------------------------

def _linear_stats_kernel(x_ref, w_ref, y_ref, stats_ref, *, n_valid):
    """y = x @ W (bf16 in, f32 accumulate) for one point tile, plus per-tile
    sum / sum-of-squares of y for the BatchNorm batch statistics.

    Rows >= n_valid (padding) are forced to exact zero so they contribute
    nothing to the statistics.
    """
    i = pl.program_id(0)
    tm = x_ref.shape[0]
    row = i * tm + jax.lax.broadcasted_iota(jnp.int32, (tm, 1), 0)
    y = jnp.dot(x_ref[...], w_ref[...], preferred_element_type=jnp.float32)
    y = jnp.where(row < n_valid, y, 0.0)
    y_ref[...] = y

    s = jnp.sum(y, axis=0, keepdims=True)        # (1, Cout)
    ss = jnp.sum(y * y, axis=0, keepdims=True)   # (1, Cout)
    row8 = jax.lax.broadcasted_iota(jnp.int32, (8, 1), 0)
    # stats block rows: 0 = sum, 1 = sum of squares, 2..7 = zero padding
    stats_ref[...] = jnp.where(row8 == 0, s, jnp.where(row8 == 1, ss, 0.0))


def linear_bnstats_pallas(x, w, n_valid, tile_n):
    np_rows, cin = x.shape
    cout = w.shape[1]
    n_tiles = np_rows // tile_n
    kernel = functools.partial(_linear_stats_kernel, n_valid=n_valid)
    return pl.pallas_call(
        kernel,
        out_shape=(
            jax.ShapeDtypeStruct((np_rows, cout), jnp.float32),
            jax.ShapeDtypeStruct((n_tiles * 8, cout), jnp.float32),
        ),
        grid=(n_tiles,),
        in_specs=[
            pl.BlockSpec((tile_n, cin), lambda i: (i, 0)),
            pl.BlockSpec((cin, cout), lambda i: (0, 0)),
        ],
        out_specs=(
            pl.BlockSpec((tile_n, cout), lambda i: (i, 0)),
            pl.BlockSpec((8, cout), lambda i: (i, 0)),
        ),
        compiler_params=pltpu.CompilerParams(dimension_semantics=("parallel",)),
    )(x, w)


# ----------------------------- sparse pool kernel -----------------------------

def _pool_kernel(tf_ref, tl_ref, clo_ref, chi_ref,           # SMEM prefetch
                 scale_ref, shift_ref, cid_ref, y_ref, coord_ref,
                 feat_out_ref, coord_out_ref):
    """Sparse segment pooling with fused BN-affine + ReLU.

    grid = (cluster tiles [parallel], relative point tiles [arbitrary]).
    Points are pre-sorted by cluster id, so cluster tile ci only visits the
    point-tile range [tf[ci], tl[ci]] (index_maps are clamped, extra grid steps
    re-use the last buffer and are pl.when-skipped).  For each visited point
    tile, only the cluster rows actually present (clo/chi per point tile) are
    reduced: per row, a (TILE_N, Cout) masked max and a (TILE_N, 8) masked sum
    are accumulated straight into the VMEM-resident output blocks — no
    (TILE_M, TILE_N, Cout) intermediate is ever materialized.
    """
    ci = pl.program_id(0)
    pj = pl.program_id(1)
    tc = feat_out_ref.shape[0]
    base = ci * tc

    @pl.when(pj == 0)
    def _init():
        feat_out_ref[...] = jnp.full(feat_out_ref.shape, -jnp.inf, feat_out_ref.dtype)
        coord_out_ref[...] = jnp.zeros(coord_out_ref.shape, coord_out_ref.dtype)

    @pl.when(pj <= tl_ref[ci] - tf_ref[ci])
    def _work():
        pt = tf_ref[ci] + pj                      # actual point-tile index
        # fused PointBatchNorm affine + ReLU on this activation tile
        act = jnp.maximum(y_ref[...] * scale_ref[...] + shift_ref[...], 0.0)
        cid = cid_ref[...]                        # (TILE_N, 1) int32 (padding = -1)
        coords = coord_ref[...]                   # (TILE_N, 8) = [x|y|z|1|0...]

        # cluster rows of this cluster tile present in this point tile
        r_lo = jnp.maximum(clo_ref[pt] - base, 0)
        r_hi = jnp.minimum(chi_ref[pt] - base + 1, tc)

        def body(r, carry):
            m = cid == (base + r)                                      # (TILE_N, 1)
            fmax = jnp.max(jnp.where(m, act, -jnp.inf), axis=0, keepdims=True)
            csum = jnp.sum(jnp.where(m, coords, 0.0), axis=0, keepdims=True)
            feat_out_ref[pl.ds(r, 1), :] = jnp.maximum(
                feat_out_ref[pl.ds(r, 1), :], fmax)
            coord_out_ref[pl.ds(r, 1), :] = coord_out_ref[pl.ds(r, 1), :] + csum
            return carry

        jax.lax.fori_loop(r_lo, r_hi, body, 0)

    @pl.when(pj == pl.num_programs(1) - 1)
    def _finalize():
        acc = coord_out_ref[...]                  # col 3 holds the point count
        coord_out_ref[...] = acc / jnp.maximum(acc[:, 3:4], 1.0)


def pool_pallas(tile_first, tile_last, pt_clo, pt_chi,
                scale, shift, cid, y, coord8, mp, tile_m, tile_n, max_span):
    np_rows, cout = y.shape
    n_ctiles = mp // tile_m

    def pt_idx(ci, pj, tf, tl, clo, chi):
        # clamp so skipped steps re-use the previous buffer (no extra DMA)
        return (jnp.minimum(tf[ci] + pj, tl[ci]), 0)

    return pl.pallas_call(
        _pool_kernel,
        out_shape=(
            jax.ShapeDtypeStruct((mp, cout), jnp.float32),
            jax.ShapeDtypeStruct((mp, 8), jnp.float32),
        ),
        grid_spec=pltpu.PrefetchScalarGridSpec(
            num_scalar_prefetch=4,
            grid=(n_ctiles, max_span),
            in_specs=[
                pl.BlockSpec((1, cout), lambda ci, pj, tf, tl, clo, chi: (0, 0)),
                pl.BlockSpec((1, cout), lambda ci, pj, tf, tl, clo, chi: (0, 0)),
                pl.BlockSpec((tile_n, 1), pt_idx),       # cluster id per point
                pl.BlockSpec((tile_n, cout), pt_idx),    # fc output y
                pl.BlockSpec((tile_n, 8), pt_idx),       # [x|y|z|1|pad]
            ],
            out_specs=(
                pl.BlockSpec((tile_m, cout), lambda ci, pj, tf, tl, clo, chi: (ci, 0)),
                pl.BlockSpec((tile_m, 8), lambda ci, pj, tf, tl, clo, chi: (ci, 0)),
            ),
        ),
        compiler_params=pltpu.CompilerParams(
            dimension_semantics=("parallel", "arbitrary")),
    )(tile_first, tile_last, pt_clo, pt_chi, scale, shift, cid, y, coord8)


# ----------------------------- GridPool forward -----------------------------

def grid_pool_forward(params, coord, feat, offset, grid_size, start=None):
    """JAX/Pallas port of GridPool.forward((coord, feat, offset), start)."""
    N, Cin = feat.shape
    Cout = params["w"].shape[1]
    B = int(offset.shape[0])

    # ---- batch index per point (offsets are tiny; host) ----
    offset_h = np.asarray(offset)
    counts_b = np.diff(np.concatenate([[0], offset_h]))
    batch_h = np.repeat(np.arange(B), counts_b).astype(np.int32)
    batch = jnp.asarray(batch_h)

    # ---- voxel-grid clustering (plain-JAX glue, not the hot path) ----
    if start is None:
        start = jax.ops.segment_min(coord, batch, num_segments=B)
    pos = coord - start[batch]
    vox = jnp.floor(pos / grid_size).astype(jnp.int32)
    nx = vox[:, 0].max() + 1
    ny = vox[:, 1].max() + 1
    nz = vox[:, 2].max() + 1
    vox_per_batch = nx * ny * nz
    # TODO(synk): int32 voxel key can overflow for very large scenes / fine
    # grid_size / many batches; switch to a two-level (batch, voxel) key then.
    key = (vox[:, 0] + vox[:, 1] * nx + vox[:, 2] * (nx * ny)
           + batch.astype(jnp.int32) * vox_per_batch)
    _, cluster = jnp.unique(key, size=N, return_inverse=True)
    cluster = cluster.reshape(-1).astype(jnp.int32)

    # ---- host-side cluster bookkeeping (output shape is data dependent) ----
    cluster_h = np.asarray(cluster)                 # the one mid-pipeline sync
    M = int(cluster_h.max()) + 1
    order_h = np.argsort(cluster_h, kind="stable")
    cid_sorted_h = cluster_h[order_h].astype(np.int32)
    counts_h = np.bincount(cluster_h, minlength=M)
    ptr_h = np.concatenate([[0], np.cumsum(counts_h)])          # (M+1,)

    # ---- tiling (per-generation safe: pool working set ~0.5 MiB / step) ----
    TILE_N = min(512, _round_up(N, 16))                         # pool point tile
    TILE_NF = min(4096, _round_up(N, TILE_N))                   # fc point tile
    TILE_NF = max(TILE_N, (TILE_NF // TILE_N) * TILE_N)
    Np = _round_up(N, TILE_NF)
    # >=2 cluster tiles when possible so the "parallel" axis feeds both v7x TCs
    TILE_M = max(8, min(256, _round_up((M + 1) // 2, 8)))
    n_ctiles = -(-M // TILE_M)
    Mp = n_ctiles * TILE_M

    # per-cluster-tile point-tile range (points sorted by cluster => contiguous)
    c_lo = np.arange(n_ctiles) * TILE_M
    c_hi = np.minimum(c_lo + TILE_M, M)
    tile_first = (ptr_h[c_lo] // TILE_N).astype(np.int32)
    tile_last = ((ptr_h[c_hi] - 1) // TILE_N).astype(np.int32)
    max_span = int((tile_last - tile_first).max()) + 1

    # per-point-tile range of cluster ids present
    n_ptiles = Np // TILE_N
    starts = np.arange(n_ptiles) * TILE_N
    ends = np.minimum(starts + TILE_N, N) - 1
    valid_t = starts < N
    pt_clo = np.where(valid_t, cid_sorted_h[np.minimum(starts, N - 1)], 0).astype(np.int32)
    pt_chi = np.where(valid_t, cid_sorted_h[np.maximum(ends, 0)], -1).astype(np.int32)

    # ---- sort points by cluster, pad to Np, build lean coord slab ----
    perm = jnp.asarray(order_h, jnp.int32)
    # bf16 fc inputs (f32 accumulation): small numerics drift vs. torch f32.
    feat_s = feat[perm].astype(jnp.bfloat16)
    coord_s = coord[perm].astype(jnp.float32)
    if Np != N:
        feat_s = jnp.zeros((Np, Cin), jnp.bfloat16).at[:N].set(feat_s)
    cid_col = jnp.full((Np, 1), -1, jnp.int32).at[:N, 0].set(jnp.asarray(cid_sorted_h))
    coord8 = (jnp.zeros((Np, 8), jnp.float32)
              .at[:N, :3].set(coord_s)
              .at[:N, 3].set(1.0))

    # ---- fc: y = feat @ W (+ fused BN batch statistics) ----
    y, stats = linear_bnstats_pallas(feat_s, params["w"].astype(jnp.bfloat16),
                                     N, TILE_NF)

    # ---- PointBatchNorm (train-mode batch stats, biased var, clamped) + ReLU ----
    # TODO(synk): BatchNorm1d running-mean/var momentum update (training side
    # effect) is not reproduced; forward math is identical.
    nft = Np // TILE_NF
    stats = stats.reshape(nft, 8, Cout)
    mean = stats[:, 0, :].sum(axis=0) / N
    var = jnp.maximum(stats[:, 1, :].sum(axis=0) / N - mean * mean, 0.0)
    scale = params["gamma"] * jax.lax.rsqrt(var + params["eps"])
    shift = params["beta"] - mean * scale

    # ---- sparse segment pooling (Pallas) ----
    feat_pool_p, coord_pool_p = pool_pallas(
        jnp.asarray(tile_first), jnp.asarray(tile_last),
        jnp.asarray(pt_clo), jnp.asarray(pt_chi),
        scale[None, :].astype(jnp.float32), shift[None, :].astype(jnp.float32),
        cid_col, y, coord8, Mp, TILE_M, TILE_N, max_span)

    feat_pool = feat_pool_p[:M]
    coord_pool = coord_pool_p[:M, :3]

    # ---- per-cluster batch / new offsets (clusters are key-sorted => batch-grouped) ----
    batch_sorted_h = batch_h[order_h]
    cluster_batch_h = batch_sorted_h[ptr_h[:-1]]
    offset_pool = jnp.asarray(
        np.cumsum(np.bincount(cluster_batch_h, minlength=B)), jnp.int32)

    return (coord_pool, feat_pool, offset_pool), cluster


# ----------------------------------- main -----------------------------------

if __name__ == "__main__":
    key = jax.random.PRNGKey(0)
    k_w, k_g, k_b, k_c, k_f = jax.random.split(key, 5)

    # small synthetic point cloud: 2 "batches" of 40 and 24 points
    B_counts = [40, 24]
    N = sum(B_counts)
    Cin, Cout = 32, 64
    grid_size = 0.25

    offset = jnp.asarray(np.cumsum(B_counts), dtype=jnp.int32)            # [40, 64]
    coord = jax.random.uniform(k_c, (N, 3), jnp.float32)                  # in [0,1)
    feat = jax.random.normal(k_f, (N, Cin), jnp.float32)

    # deterministic params (nn.Linear(bias=False) + BatchNorm1d affine)
    params = {
        "w": jax.random.normal(k_w, (Cin, Cout), jnp.float32) / math.sqrt(Cin),
        "gamma": 1.0 + 0.1 * jax.random.normal(k_g, (Cout,), jnp.float32),
        "beta": 0.1 * jax.random.normal(k_b, (Cout,), jnp.float32),
        "eps": 1e-5,
    }

    (coord_p, feat_p, offset_p), cluster = grid_pool_forward(
        params, coord, feat, offset, grid_size)
    jax.block_until_ready((coord_p, feat_p, offset_p, cluster))

    # ---- pure-JAX reference of the hot path (same bf16 matmul inputs) ----
    y_ref = jnp.dot(feat.astype(jnp.bfloat16), params["w"].astype(jnp.bfloat16),
                    preferred_element_type=jnp.float32)
    m = y_ref.mean(0)
    v = jnp.maximum(((y_ref - m) ** 2).mean(0), 0.0)
    a_ref = jnp.maximum(
        (y_ref - m) * jax.lax.rsqrt(v + params["eps"]) * params["gamma"] + params["beta"],
        0.0)
    M = int(feat_p.shape[0])
    feat_ref = jax.ops.segment_max(a_ref, cluster, num_segments=M)
    cnt_ref = jax.ops.segment_sum(jnp.ones((N, 1), jnp.float32), cluster, num_segments=M)
    coord_ref = jax.ops.segment_sum(coord, cluster, num_segments=M) / cnt_ref

    assert np.allclose(np.asarray(feat_p), np.asarray(feat_ref), atol=2e-3, rtol=2e-3)
    assert np.allclose(np.asarray(coord_p), np.asarray(coord_ref), atol=1e-4, rtol=1e-4)
    assert int(offset_p[-1]) == M

    print("KERNEL_OK")
</pallas_src>

<mosaic_0001>
module attributes {stable_mosaic.version = 11 : i64} {
  func.func @_linear_stats_kernel(%arg0: i32, %arg1: memref<64x32xbf16, #tpu.memory_space<vmem>>, %arg2: memref<32x64xbf16, #tpu.memory_space<vmem>>, %arg3: memref<64x64xf32, #tpu.memory_space<vmem>>, %arg4: memref<8x64xf32, #tpu.memory_space<vmem>>) attributes {dimension_semantics = [#tpu.dimension_semantics<parallel>], iteration_bounds = array<i64: 1>, scalar_prefetch = 0 : i64, scratch_operands = 0 : i64, tpu.core_type = #tpu.core_type<tc>, window_params = [{transform_indices = @transform_0, window_bounds = array<i64: 64, 32>}, {pipeline_mode = #tpu.pipeline_mode<synchronous>, transform_indices = @transform_1, window_bounds = array<i64: 32, 64>}, {transform_indices = @transform_2, window_bounds = array<i64: 64, 64>}, {transform_indices = @transform_3, window_bounds = array<i64: 8, 64>}]} {
    %c64_i32 = arith.constant 64 : i32
    %0 = arith.muli %arg0, %c64_i32 : i32
    %1 = tpu.iota {dimensions = array<i32: 0>} : vector<64x1xi32>
    %2 = vector.broadcast %0 : i32 to vector<64x1xi32>
    %3 = arith.addi %2, %1 : vector<64x1xi32>
    %c0 = arith.constant 0 : index
    %c0_0 = arith.constant 0 : index
    %4 = vector.load %arg1[%c0, %c0_0] : memref<64x32xbf16, #tpu.memory_space<vmem>>, vector<64x32xbf16>
    %c0_1 = arith.constant 0 : index
    %c0_2 = arith.constant 0 : index
    %5 = vector.load %arg2[%c0_1, %c0_2] : memref<32x64xbf16, #tpu.memory_space<vmem>>, vector<32x64xbf16>
    %cst = arith.constant dense<0.000000e+00> : vector<64x64xf32>
    %6 = tpu.matmul %4, %5, %cst {dimension_numbers = #tpu.dot_dimension_numbers<[1], [0], [0], [1], [0, 0, 1, 1], [], []>} : vector<64x32xbf16>, vector<32x64xbf16>, vector<64x64xf32> -> vector<64x64xf32>
    %c64_i32_3 = arith.constant 64 : i32
    %7 = vector.broadcast %c64_i32_3 : i32 to vector<64x1xi32>
    %8 = arith.cmpi slt, %3, %7 : vector<64x1xi32>
    %cst_4 = arith.constant 0.000000e+00 : f32
    %9 = vector.shape_cast %8 : vector<64x1xi1> to vector<64x1xi1>
    %10 = vector.broadcast %9 : vector<64x1xi1> to vector<64x64xi1>
    %11 = vector.broadcast %cst_4 : f32 to vector<64x64xf32>
    %12 = arith.select %10, %6, %11 : vector<64x64xi1>, vector<64x64xf32>
    %c0_5 = arith.constant 0 : index
    %c0_6 = arith.constant 0 : index
    %13 = vector.load %arg3[%c0_5, %c0_6] : memref<64x64xf32, #tpu.memory_space<vmem>>, vector<64x64xf32>
    tpu.vector_store %arg3[%c0_5, %c0_6], %12 {strides = array<i32>} : memref<64x64xf32, #tpu.memory_space<vmem>>, vector<64x64xf32>,
    %cst_7 = arith.constant dense<0.000000e+00> : vector<64xf32>
    %14 = vector.multi_reduction <add>, %12, %cst_7 [0] : vector<64x64xf32> to vector<64xf32>
    %15 = vector.shape_cast %14 : vector<64xf32> to vector<1x64xf32>
    %16 = arith.mulf %12, %12 : vector<64x64xf32>
    %cst_8 = arith.constant dense<0.000000e+00> : vector<64xf32>
    %17 = vector.multi_reduction <add>, %16, %cst_8 [0] : vector<64x64xf32> to vector<64xf32>
    %18 = vector.shape_cast %17 : vector<64xf32> to vector<1x64xf32>
    %19 = tpu.iota {dimensions = array<i32: 0>} : vector<8x1xi32>
    %c0_i32 = arith.constant 0 : i32
    %20 = vector.broadcast %c0_i32 : i32 to vector<8x1xi32>
    %21 = arith.cmpi eq, %19, %20 : vector<8x1xi32>
    %c1_i32 = arith.constant 1 : i32
    %22 = vector.broadcast %c1_i32 : i32 to vector<8x1xi32>
    %23 = arith.cmpi eq, %19, %22 : vector<8x1xi32>
    %cst_9 = arith.constant 0.000000e+00 : f32
    %24 = vector.shape_cast %23 : vector<8x1xi1> to vector<8x1xi1>
    %25 = vector.broadcast %24 : vector<8x1xi1> to vector<8x64xi1>
    %26 = vector.shape_cast %18 : vector<1x64xf32> to vector<1x64xf32>
    %27 = vector.broadcast %26 : vector<1x64xf32> to vector<8x64xf32>
    %28 = vector.broadcast %cst_9 : f32 to vector<8x64xf32>
    %29 = arith.select %25, %27, %28 : vector<8x64xi1>, vector<8x64xf32>
    %30 = vector.shape_cast %21 : vector<8x1xi1> to vector<8x1xi1>
    %31 = vector.broadcast %30 : vector<8x1xi1> to vector<8x64xi1>
    %32 = vector.shape_cast %15 : vector<1x64xf32> to vector<1x64xf32>
    %33 = vector.broadcast %32 : vector<1x64xf32> to vector<8x64xf32>
    %34 = arith.select %31, %33, %29 : vector<8x64xi1>, vector<8x64xf32>
    %c0_10 = arith.constant 0 : index
    %c0_11 = arith.constant 0 : index
    %35 = vector.load %arg4[%c0_10, %c0_11] : memref<8x64xf32, #tpu.memory_space<vmem>>, vector<8x64xf32>
    tpu.vector_store %arg4[%c0_10, %c0_11], %34 {strides = array<i32>} : memref<8x64xf32, #tpu.memory_space<vmem>>, vector<8x64xf32>,
    return
  }
  func.func @transform_0(%arg0: i32) -> (i32, i32) {
    %c0_i32 = arith.constant 0 : i32
    %c0_i32_0 = arith.constant 0 : i32
    return %arg0, %c0_i32 : i32, i32
  }
  func.func @transform_1(%arg0: i32) -> (i32, i32) {
    %c0_i32 = arith.constant 0 : i32
    %c0_i32_0 = arith.constant 0 : i32
    %c0_i32_1 = arith.constant 0 : i32
    return %c0_i32, %c0_i32_0 : i32, i32
  }
  func.func @transform_2(%arg0: i32) -> (i32, i32) {
    %c0_i32 = arith.constant 0 : i32
    %c0_i32_0 = arith.constant 0 : i32
    return %arg0, %c0_i32 : i32, i32
  }
  func.func @transform_3(%arg0: i32) -> (i32, i32) {
    %c0_i32 = arith.constant 0 : i32
    %c0_i32_0 = arith.constant 0 : i32
    return %arg0, %c0_i32 : i32, i32
  }
}

</mosaic_0001>

<llo_original>
// kernel: tpu_custom_call.1
$region0: #{tpu_custom_call.1}
  #allocation0 [shape = 'u32[]', space=smem, size = 0x4, offset = 0x4, fixed_abs, tag = 'smem constant byte address 0x4 - core index']
  #allocation1 [shape = 'u32[144,128]{1,0:T(1,128)}', space=vmem, size = 0x12000, scoped, tag = 'internal scratch']
  %s0 = inlined_call_operand.vmem [shape: bf16[64,32], index: 0, kind: input, shape index: {}]
  %s1 = inlined_call_operand.vmem [shape: bf16[32,64], index: 1, kind: input, shape index: {}]
  %s2 = inlined_call_operand.hbm [shape: f32[64,64], index: 2, kind: output, shape index: {0}]
  %s3 = inlined_call_operand.hbm [shape: f32[8,64], index: 3, kind: output, shape index: {1}]
  %4 = xla_tuple %s2, %s3
  %s5 = sld [smem:[#allocation0]]
  $region26: #{tpu_custom_call.1} parent=0
    _
  %s7 = ssub.s32 1, %s5
  %s8 = scalar_select 0, %s7, %s5
  $region1: #{tpu_custom_call.1} parent=0
    #allocation2 [shape = 'u8[32768]{0}', space=vmem, size = 0x8000, scoped, tag = 'output window, operand 0, single buffered']
    #allocation3 [shape = 's32[1]{0}', space=sflag, size = 0x4, scoped, tag = 'scoped memory for tpu_custom_call.1']
    #allocation4 [shape = 'u8[4096]{0}', space=vmem, size = 0x1000, scoped, tag = 'output window, operand 1, single buffered']
    #allocation5 [shape = 's32[1]{0}', space=sflag, size = 0x4, scoped, tag = 'scoped memory for tpu_custom_call.1']
    %9 = vsyncpa [#allocation3], 0
    %10 = vsyncpa [#allocation5], 0
    // Predicated region
    $region2: #{tpu_custom_call.1} parent=1 // pred_check
      _
    $region3: #{tpu_custom_call.1} parent=1 // pred_check_branch
      %12 = sbr.rel (0) target = $region5
    $region4: #{tpu_custom_call.1} parent=1 // pred_region
      _
    $region5: #{tpu_custom_call.1} parent=1 // pred_fallthru
      _
    // Predicated region
    $region6: #{tpu_custom_call.1} parent=1 // pred_check
      _
    $region7: #{tpu_custom_call.1} parent=1 // pred_check_branch
      %14 = sbr.rel (0) target = $region9
    $region8: #{tpu_custom_call.1} parent=1 // pred_region
      _
    $region9: #{tpu_custom_call.1} parent=1 // pred_fallthru
      _
    %s16 = smul.u32 0, 64
    %v17 = vlaneseq
    %v18 = vshrl.u32 %v17, 7
    %v19 = vadd.s32 %v18, 8
    %v20 = vadd.s32 %v18, 16
    %v21 = vadd.s32 %v18, 24
    %v22 = vadd.s32 %v18, 32
    %v23 = vadd.s32 %v18, 40
    %v24 = vadd.s32 %v18, 48
    %v25 = vadd.s32 %v18, 56
    %v26 = vstv %s16
    %v27 = vadd.s32 %v26, %v18
    %v28 = vadd.s32 %v26, %v19
    %v29 = vadd.s32 %v26, %v20
    %v30 = vadd.s32 %v26, %v21
    %v31 = vadd.s32 %v26, %v22
    %v32 = vadd.s32 %v26, %v23
    %v33 = vadd.s32 %v26, %v24
    %v34 = vadd.s32 %v26, %v25
    %v35 = vld [vmem:[%s0] sm:$0xf]
    %v36 = vld [vmem:[%s0 + $0x4] sm:$0xf]
    %v37 = vld [vmem:[%s0 + $0x8] sm:$0xf]
    %v38 = vld [vmem:[%s0 + $0xc] sm:$0xf]
    %v39 = vld [vmem:[%s0 + $0x10] sm:$0xf]
    %v40 = vld [vmem:[%s0 + $0x14] sm:$0xf]
    %v41 = vld [vmem:[%s0 + $0x18] sm:$0xf]
    %v42 = vld [vmem:[%s0 + $0x1c] sm:$0xf]
    %v43 = vld [vmem:[%s1] sm:$0xf]
    %v44 = vld [vmem:[%s1 + $0x4] sm:$0xf]
    %v45 = vld [vmem:[%s1 + $0x8] sm:$0xf]
    %v46 = vld [vmem:[%s1 + $0xc] sm:$0xf]
    %v55 = vunpack.c.l.b16 %v35
    %v56 = vunpack.c.l.b16 %v36
    %v57 = vunpack.c.l.b16 %v37
    %v58 = vunpack.c.l.b16 %v38
    %v59 = vunpack.c.l.b16 %v39
    %v60 = vunpack.c.l.b16 %v40
    %v61 = vunpack.c.l.b16 %v41
    %v62 = vunpack.c.l.b16 %v42
    %v63 = vpack.c.b16 %v56, %v55
    %v64 = vpack.c.b16 %v58, %v57
    %v65 = vpack.c.b16 %v60, %v59
    %v66 = vpack.c.b16 %v62, %v61
    %v71 = vunpack.c.l.b16 %v43
    %v72 = vunpack.c.l.b16 %v44
    %v73 = vunpack.c.l.b16 %v45
    %v74 = vunpack.c.l.b16 %v46
    %v75 = vpack.c.b16 %v72, %v71
    %v76 = vpack.c.b16 %v74, %v73
    %vm79 = vcmask 261120
    %v81 = vsel %vm79, %v63, 0
    %v84 = vsel %vm79, %v64, 0
    %v87 = vsel %vm79, %v65, 0
    %v90 = vsel %vm79, %v66, 0
    %92 = vmatprep.subr.bf16.mxu0 0
    %93 = vmatpush1.bf16.msra.mxu0 0
    %94 = vmatprep.subr.bf16.mxu0 0
    %95 = vmatpush1.bf16.msra.mxu0 0
    %96 = vmatprep.subr.bf16.mxu0 0
    %97 = vmatpush1.bf16.msra.mxu0 0
    %98 = vmatprep.subr.bf16.mxu0 0
    %99 = vmatpush1.bf16.msra.mxu0 0
    %100 = vmatprep.subr.bf16.mxu0 0
    %101 = vmatpush1.bf16.msra.mxu0 0
    %102 = vmatprep.subr.bf16.mxu0 0
    %103 = vmatpush1.bf16.msra.mxu0 0
    %104 = vmatprep.subr.bf16.mxu0 0
    %105 = vmatpush1.bf16.msra.mxu0 %v76
    %106 = vmatprep.subr.bf16.mxu0 0
    %107 = vmatpush1.bf16.msra.mxu0 %v75
    %108 = vmatprep.subr.bf16.mxu0 0
    %109 = vmatpush2.bf16.msra.mxu0 0
    %110 = vmatprep.subr.bf16.mxu0 0
    %111 = vmatpush2.bf16.msra.mxu0 0
    %112 = vmatprep.subr.bf16.mxu0 0
    %113 = vmatpush2.bf16.msra.mxu0 0
    %114 = vmatprep.subr.bf16.mxu0 0
    %115 = vmatpush2.bf16.msra.mxu0 0
    %116 = vmatprep.subr.bf16.mxu0 0
    %117 = vmatpush2.bf16.msra.mxu0 0
    %118 = vmatprep.subr.bf16.mxu0 0
    %119 = vmatpush2.bf16.msra.mxu0 0
    %120 = vmatprep.subr.bf16.mxu0 0
    %121 = vmatpush2.bf16.msra.mxu0 0
    %122 = vmatprep.subr.bf16.mxu0 0
    %123 = vmatpush2.bf16.msra.mxu0 0
    %124 = vmatprep.mubr.bf16.mxu0 0
    %125 = vmatmul.mubr.bf16.gmra.mxu0 %v81
    %v126 = vpop.f32.mrf.mxu0
    %v127 = vadd.f32 0.0, %v126
    %v128 = vpop.f32.mrf.mxu0
    %v129 = vpop.f32.mrf.mxu0
    %v130 = vadd.f32 0.0, %v129
    %v131 = vpop.f32.mrf.mxu0
    %132 = vmatprep.mubr.bf16.mxu0 0
    %133 = vmatmul.mubr.bf16.gmra.mxu0 %v84
    %v134 = vpop.f32.mrf.mxu0
    %v135 = vadd.f32 0.0, %v134
    %v136 = vpop.f32.mrf.mxu0
    %v137 = vpop.f32.mrf.mxu0
    %v138 = vadd.f32 0.0, %v137
    %v139 = vpop.f32.mrf.mxu0
    %140 = vmatprep.mubr.bf16.mxu0 0
    %141 = vmatmul.mubr.bf16.gmra.mxu0 %v87
    %v142 = vpop.f32.mrf.mxu0
    %v143 = vadd.f32 0.0, %v142
    %v144 = vpop.f32.mrf.mxu0
    %v145 = vpop.f32.mrf.mxu0
    %v146 = vadd.f32 0.0, %v145
    %v147 = vpop.f32.mrf.mxu0
    %148 = vmatprep.mubr.bf16.mxu0 0
    %149 = vmatmul.mubr.bf16.gmra.mxu0 %v90
    %v150 = vpop.f32.mrf.mxu0
    %v151 = vadd.f32 0.0, %v150
    %v152 = vpop.f32.mrf.mxu0
    %v153 = vpop.f32.mrf.mxu0
    %v154 = vadd.f32 0.0, %v153
    %v155 = vpop.f32.mrf.mxu0
    %156 = vdwg.mxu0
    %vm157 = vcmp.lt.s32.totalorder %v27, 64
    %vm158 = vcmp.lt.s32.totalorder %v28, 64
    %vm159 = vcmp.lt.s32.totalorder %v29, 64
    %vm160 = vcmp.lt.s32.totalorder %v30, 64
    %vm161 = vcmp.lt.s32.totalorder %v31, 64
    %vm162 = vcmp.lt.s32.totalorder %v32, 64
    %vm163 = vcmp.lt.s32.totalorder %v33, 64
    %vm164 = vcmp.lt.s32.totalorder %v34, 64
    %v165 = vsel %vm157, 1, 0
    %v166 = vsel %vm158, 1, 0
    %v167 = vsel %vm159, 1, 0
    %v168 = vsel %vm160, 1, 0
    %v169 = vsel %vm161, 1, 0
    %v170 = vsel %vm162, 1, 0
    %v171 = vsel %vm163, 1, 0
    %v172 = vsel %vm164, 1, 0
    %vm173 = vcmp.eq.s32.totalorder %v165, 1
    %vm174 = vcmp.eq.s32.totalorder %v166, 1
    %vm175 = vcmp.eq.s32.totalorder %v167, 1
    %vm176 = vcmp.eq.s32.totalorder %v168, 1
    %vm177 = vcmp.eq.s32.totalorder %v169, 1
    %vm178 = vcmp.eq.s32.totalorder %v170, 1
    %vm179 = vcmp.eq.s32.totalorder %v171, 1
    %vm180 = vcmp.eq.s32.totalorder %v172, 1
    %v181 = vsel %vm173, %v127, 0.0
    %v182 = vsel %vm174, %v130, 0.0
    %v183 = vsel %vm175, %v135, 0.0
    %v184 = vsel %vm176, %v138, 0.0
    %v185 = vsel %vm177, %v143, 0.0
    %v186 = vsel %vm178, %v146, 0.0
    %v187 = vsel %vm179, %v151, 0.0
    %v188 = vsel %vm180, %v154, 0.0
    %vm189 = vcmask 523264
    %190 = vst.msk [vmem:[#allocation2] sm:$0xff] %vm189, %v181
    %191 = vst.msk [vmem:[#allocation2 + $0x8] sm:$0xff] %vm189, %v182
    %192 = vst.msk [vmem:[#allocation2 + $0x10] sm:$0xff] %vm189, %v183
    %193 = vst.msk [vmem:[#allocation2 + $0x18] sm:$0xff] %vm189, %v184
    %194 = vst.msk [vmem:[#allocation2 + $0x20] sm:$0xff] %vm189, %v185
    %195 = vst.msk [vmem:[#allocation2 + $0x28] sm:$0xff] %vm189, %v186
    %196 = vst.msk [vmem:[#allocation2 + $0x30] sm:$0xff] %vm189, %v187
    %197 = vst.msk [vmem:[#allocation2 + $0x38] sm:$0xff] %vm189, %v188
    %v198 = vsel %vm189, %v181, 0.0
    %v199 = vsel %vm189, %v182, 0.0
    %v200 = vadd.f32 %v198, %v199
    %v201 = vsel %vm189, %v183, 0.0
    %v202 = vadd.f32 %v200, %v201
    %v203 = vsel %vm189, %v184, 0.0
    %v204 = vadd.f32 %v202, %v203
    %v205 = vsel %vm189, %v185, 0.0
    %v206 = vadd.f32 %v204, %v205
    %v207 = vsel %vm189, %v186, 0.0
    %v208 = vadd.f32 %v206, %v207
    %v209 = vsel %vm189, %v187, 0.0
    %v210 = vadd.f32 %v208, %v209
    %v211 = vsel %vm189, %v188, 0.0
    %v212 = vadd.f32 %v210, %v211
    %v213 = vrot.slane %v212, 4
    %v214 = vadd.f32 %v212, %v213
    %v215 = vrot.slane %v214, 2
    %v216 = vadd.f32 %v214, %v215
    %v217 = vrot.slane %v216, 1
    %v218 = vadd.f32 %v216, %v217
    %v219 = vmul.f32 %v181, %v181
    %v220 = vmul.f32 %v182, %v182
    %v221 = vmul.f32 %v183, %v183
    %v222 = vmul.f32 %v184, %v184
    %v223 = vmul.f32 %v185, %v185
    %v224 = vmul.f32 %v186, %v186
    %v225 = vmul.f32 %v187, %v187
    %v226 = vmul.f32 %v188, %v188
    %v227 = vsel %vm189, %v219, 0.0
    %v228 = vsel %vm189, %v220, 0.0
    %v229 = vadd.f32 %v227, %v228
    %v230 = vsel %vm189, %v221, 0.0
    %v231 = vadd.f32 %v229, %v230
    %v232 = vsel %vm189, %v222, 0.0
    %v233 = vadd.f32 %v231, %v232
    %v234 = vsel %vm189, %v223, 0.0
    %v235 = vadd.f32 %v233, %v234
    %v236 = vsel %vm189, %v224, 0.0
    %v237 = vadd.f32 %v235, %v236
    %v238 = vsel %vm189, %v225, 0.0
    %v239 = vadd.f32 %v237, %v238
    %v240 = vsel %vm189, %v226, 0.0
    %v241 = vadd.f32 %v239, %v240
    %v242 = vrot.slane %v241, 4
    %v243 = vadd.f32 %v241, %v242
    %v244 = vrot.slane %v243, 2
    %v245 = vadd.f32 %v243, %v244
    %v246 = vrot.slane %v245, 1
    %v247 = vadd.f32 %v245, %v246
    %vm248 = vcmp.eq.s32.totalorder %v18, 0
    %vm249 = vcmp.eq.s32.totalorder %v18, 1
    %v250 = vsel %vm249, 1, 0
    %vm251 = vcmp.eq.s32.totalorder %v250, 1
    %v252 = vsel %vm251, %v247, 0.0
    %v253 = vsel %vm248, 1, 0
    %vm254 = vcmp.eq.s32.totalorder %v253, 1
    %v255 = vsel %vm254, %v218, %v252
    %256 = vst.msk [vmem:[#allocation4] sm:$0xff] %vm189, %v255
    // Predicated region
    $region10: #{tpu_custom_call.1} parent=1 // pred_check
      _
    $region11: #{tpu_custom_call.1} parent=1 // pred_check_branch
      %258 = sbr.rel (0) target = $region13
    $region12: #{tpu_custom_call.1} parent=1 // pred_region
      %s260 = ssub.s32 1024, 1024
      %261 = vsyncadd [#allocation3], %s260
      %s262 = sshll.u32 [#allocation2], 4
      %s263 = int_to_ptr.vmem [resolvable:$true] %s262
      %268 = dma.vmem_to_hbm [thread:$0]  %s263, 1024, %s2, [#allocation3], 128, 128, 8
    $region13: #{tpu_custom_call.1} parent=1 // pred_fallthru
      _
    // Predicated region
    $region14: #{tpu_custom_call.1} parent=1 // pred_check
      _
    $region15: #{tpu_custom_call.1} parent=1 // pred_check_branch
      %270 = sbr.rel (0) target = $region17
    $region16: #{tpu_custom_call.1} parent=1 // pred_region
      %s272 = ssub.s32 128, 128
      %273 = vsyncadd [#allocation5], %s272
      %s275 = sshll.u32 [#allocation4], 4
      %s276 = int_to_ptr.vmem [resolvable:$true] %s275
      %278 = dma.vmem_to_hbm [thread:$0]  %s276, 128, %s3, [#allocation5]
    $region17: #{tpu_custom_call.1} parent=1 // pred_fallthru
      _
    // Predicated region
    $region18: #{tpu_custom_call.1} parent=1 // pred_check
      _
    $region19: #{tpu_custom_call.1} parent=1 // pred_check_branch
      %280 = sbr.rel (0) target = $region21
    $region20: #{tpu_custom_call.1} parent=1 // pred_region
      %281 = dma.done [#allocation3], 1024
    $region21: #{tpu_custom_call.1} parent=1 // pred_fallthru
      _
    // Predicated region
    $region22: #{tpu_custom_call.1} parent=1 // pred_check
      _
    $region23: #{tpu_custom_call.1} parent=1 // pred_check_branch
      %283 = sbr.rel (0) target = $region25
    $region24: #{tpu_custom_call.1} parent=1 // pred_region
      %284 = dma.done [#allocation5], 128
    $region25: #{tpu_custom_call.1} parent=1 // pred_fallthru
      _
    %285 = vsyncpa [#allocation3], 1
    %286 = vsyncpa [#allocation5], 1

</llo_original>
